<compile_context>
chip_gen: v5e
topology: v5e:2x2
jax: 0.10.0
libtpu: 0.0.40
codegen_flags: <defaults>
</compile_context>

<pallas_src>
import jax
import jax.numpy as jnp
from jax.experimental import pallas as pl
from jax.experimental.pallas import tpu as pltpu

# ---- model config (small synthetic sizes) ----
FEATURES_DIMS = 32     # features_dims  (ResNet channel dim stand-in)
HIDDEN_DIMS = 32       # hidden_state_dims
ATTENTION_DIMS = 32    # attention_dims
WORD_EMB_DIMS = 16     # word_emb_dims
VOCAB_SIZE = 64        # vocab_size
DROP_PROB = 0.1        # dropout is identity here (eval / deterministic semantics)
KSIZE = 4              # stand-in conv kernel size == stride


# ----------------------- encoder (Pallas matmul over im2col patches) -----------------------
def _encoder_matmul_kernel(p_ref, w_ref, b_ref, o_ref):
    o_ref[...] = (jnp.dot(p_ref[...], w_ref[...],
                          preferred_element_type=jnp.float32) + b_ref[...]).astype(o_ref.dtype)


def encode_images(images, conv_w, conv_b):
    # TODO(synk): pretrained ResNet101 backbone is not replicated; a single strided-conv
    # stand-in produces the (B, P, F) channels-last feature grid with matching layout.
    # TODO(synk): at real image sizes, tile M=B*Ph*Pw with a 'parallel' grid instead of grid=(1,).
    B, C, H, W = images.shape
    k = KSIZE
    Ph, Pw = H // k, W // k
    patches = images.reshape(B, C, Ph, k, Pw, k)
    patches = patches.transpose(0, 2, 4, 1, 3, 5).reshape(B * Ph * Pw, C * k * k)
    Fd = conv_w.shape[0]
    w2d = conv_w.reshape(Fd, C * k * k).T          # (C*k*k, F)
    b2d = conv_b.reshape(1, Fd)
    out = pl.pallas_call(
        _encoder_matmul_kernel,
        out_shape=jax.ShapeDtypeStruct((B * Ph * Pw, Fd), jnp.float32),
        grid=(1,),
        in_specs=[pl.BlockSpec(patches.shape, lambda i: (0, 0)),
                  pl.BlockSpec(w2d.shape, lambda i: (0, 0)),
                  pl.BlockSpec(b2d.shape, lambda i: (0, 0))],
        out_specs=pl.BlockSpec((B * Ph * Pw, Fd), lambda i: (0, 0)),
    )(patches, w2d, b2d)
    return out.reshape(B, Ph * Pw, Fd)             # (B, P, F) == permute(0,2,3,1).view(B,-1,C)


# ----------------------- decoder: full time loop inside ONE kernel -----------------------
def _decoder_kernel(feats_ref, embf_ref,
                    Uw_ref, Ub_ref, Awt_ref, Ab_ref,
                    HCw_ref, HCb_ref,
                    WWhh_ref, WWhhb_ref,
                    WihE_ref, bih_ref, WihC_ref,
                    Fw_ref, Fb_ref,
                    preds_ref, alphas_ref):
    feats = feats_ref[...].astype(jnp.float32)          # (B, P, F)
    B, P, Fd = feats.shape
    Ad = Uw_ref.shape[1]
    Hd = HCw_ref.shape[1] // 2
    H4 = 4 * Hd
    Tm1 = preds_ref.shape[0]

    feats2d = feats.reshape(B * P, Fd)                  # done once, not per step

    # ---- hoisted, time-invariant work (one MXU pass each) ----
    # attention U-projection of the image features
    u_hs = (jnp.dot(feats2d, Uw_ref[...], preferred_element_type=jnp.float32)
            + Ub_ref[...]).reshape(B, P, Ad)                          # (B, P, A)
    # embedding contribution to the LSTM gates for ALL time steps at once
    eg = (jnp.dot(embf_ref[...], WihE_ref[...], preferred_element_type=jnp.float32)
          + bih_ref[...]).reshape(Tm1, B, H4)                         # (Tm1, B, 4H)
    # init_hidden_state: h0 / c0 from the mean feature, fused into one matmul [Hw | Cw]
    fmean = jnp.mean(feats, axis=1)                                   # (B, F)
    hc0 = jnp.dot(fmean, HCw_ref[...], preferred_element_type=jnp.float32) + HCb_ref[...]
    h = hc0[:, :Hd]
    c = hc0[:, Hd:]

    aw = Awt_ref[...].reshape(1, 1, Ad)                               # (1, 1, A)
    ab = Ab_ref[...]                                                  # (1, 1)
    WWhh = WWhh_ref[...]                                              # (Hd, 4H + A)
    WWhhb = WWhhb_ref[...]                                            # (1, 4H + A)
    WihC = WihC_ref[...]                                              # (F, 4H)
    Fw = Fw_ref[...]
    Fb = Fb_ref[...]

    # fully unrolled caption time loop (Tm1 is small and static)
    for t in range(Tm1):
        # fused h-projection: columns are [Whh | Ww] -> gates_h (B,4H), w_hs (B,A)
        hproj = jnp.dot(h, WWhh, preferred_element_type=jnp.float32) + WWhhb
        gates_h = hproj[:, :H4]
        w_hs = hproj[:, H4:]

        # ---- AttentionLayer (score projection on VPU/XLU, no degenerate MXU pass) ----
        combined = jnp.tanh(u_hs + w_hs[:, None, :])                  # (B, P, A)
        scores = jnp.sum(combined * aw, axis=-1) + ab                 # (B, P)
        scores = scores - jnp.max(scores, axis=1, keepdims=True)
        e = jnp.exp(scores)
        alpha = e * pl.reciprocal(jnp.sum(e, axis=1, keepdims=True), approx=True)
        context = jnp.sum(feats * alpha[:, :, None], axis=1)          # (B, F)

        # ---- LSTMCell (PyTorch gate order i, f, g, o); emb@Wih part precomputed ----
        gates = (eg[t] + gates_h
                 + jnp.dot(context, WihC, preferred_element_type=jnp.float32))  # (B, 4H)
        sg = jax.nn.sigmoid(gates)                                    # full-vreg EUP pass
        tg = jnp.tanh(gates)                                          # full-vreg EUP pass
        i_g = sg[:, 0:Hd]
        f_g = sg[:, Hd:2 * Hd]
        g_g = tg[:, 2 * Hd:3 * Hd]
        o_g = sg[:, 3 * Hd:4 * Hd]
        c = f_g * c + i_g * g_g
        h = o_g * jnp.tanh(c)

        # ---- output head (dropout == identity in eval) ----
        logits = jnp.dot(h, Fw, preferred_element_type=jnp.float32) + Fb
        preds_ref[t, :, :] = logits.astype(preds_ref.dtype)
        alphas_ref[t, :, :] = alpha.astype(alphas_ref.dtype)


def decoder_forward(feats, captions, params):
    B, P, Fd = feats.shape
    T = captions.shape[1]
    Tm1 = T - 1                                           # captions_len
    E = WORD_EMB_DIMS
    Hd, V = HIDDEN_DIMS, VOCAB_SIZE

    # embedding gather (glue), time-major and flattened for one in-kernel matmul
    emb_all = params['emb_table'][captions[:, :Tm1]]      # (B, Tm1, E)
    emb_flat = jnp.transpose(emb_all, (1, 0, 2)).reshape(Tm1 * B, E).astype(jnp.float32)

    # weight fusion / pre-transposition (tiny, done once per call, outside the hot loop)
    Awt = params['Aw'].T                                              # (1, A)
    HCw = jnp.concatenate([params['Hw'], params['Cw']], axis=1)       # (F, 2H)
    HCb = jnp.concatenate([params['Hb'], params['Cb']], axis=1)       # (1, 2H)
    WWhh = jnp.concatenate([params['Whh'], params['Ww']], axis=1)     # (H, 4H + A)
    WWhhb = jnp.concatenate([params['bhh'], params['Wb']], axis=1)    # (1, 4H + A)
    WihE = params['Wih'][:E]                                          # (E, 4H)
    WihC = params['Wih'][E:]                                          # (F, 4H)

    operands = [
        feats, emb_flat,
        params['Uw'], params['Ub'], Awt, params['Ab'],
        HCw, HCb, WWhh, WWhhb,
        WihE, params['bih'], WihC,
        params['Fw'], params['Fb'],
    ]

    def fixed_spec(a):
        nd = a.ndim
        return pl.BlockSpec(a.shape, lambda i, _nd=nd: (0,) * _nd)

    preds, alphas = pl.pallas_call(
        _decoder_kernel,
        out_shape=(jax.ShapeDtypeStruct((Tm1, B, V), jnp.float32),
                   jax.ShapeDtypeStruct((Tm1, B, P), jnp.float32)),
        grid=(1,),
        in_specs=[fixed_spec(a) for a in operands],
        out_specs=(pl.BlockSpec((Tm1, B, V), lambda i: (0, 0, 0)),
                   pl.BlockSpec((Tm1, B, P), lambda i: (0, 0, 0))),
        compiler_params=pltpu.CompilerParams(dimension_semantics=("arbitrary",)),
    )(*operands)

    preds = jnp.transpose(preds, (1, 0, 2))    # (B, Tm1, vocab)
    alphas = jnp.transpose(alphas, (1, 0, 2))  # (B, Tm1, P)
    return preds, alphas


# ----------------------- deterministic parameter init -----------------------
def init_params(key):
    ks = jax.random.split(key, 11)
    s = 0.1

    def lin(k, in_d, out_d):
        kw, kb = jax.random.split(k)
        return (jax.random.normal(kw, (in_d, out_d), jnp.float32) * s,
                jax.random.normal(kb, (1, out_d), jnp.float32) * s)

    p = {}
    p['Uw'], p['Ub'] = lin(ks[0], FEATURES_DIMS, ATTENTION_DIMS)
    p['Ww'], p['Wb'] = lin(ks[1], HIDDEN_DIMS, ATTENTION_DIMS)
    p['Aw'], p['Ab'] = lin(ks[2], ATTENTION_DIMS, 1)
    p['Hw'], p['Hb'] = lin(ks[3], FEATURES_DIMS, HIDDEN_DIMS)
    p['Cw'], p['Cb'] = lin(ks[4], FEATURES_DIMS, HIDDEN_DIMS)
    p['Wih'], p['bih'] = lin(ks[5], WORD_EMB_DIMS + FEATURES_DIMS, 4 * HIDDEN_DIMS)
    p['Whh'], p['bhh'] = lin(ks[6], HIDDEN_DIMS, 4 * HIDDEN_DIMS)
    p['Fw'], p['Fb'] = lin(ks[7], HIDDEN_DIMS, VOCAB_SIZE)
    p['emb_table'] = jax.random.normal(ks[8], (VOCAB_SIZE, WORD_EMB_DIMS), jnp.float32) * s
    p['conv_w'] = jax.random.normal(ks[9], (FEATURES_DIMS, 3, KSIZE, KSIZE), jnp.float32) * s
    p['conv_b'] = jax.random.normal(ks[10], (FEATURES_DIMS,), jnp.float32) * s
    return p


def encoder_decoder_forward(images, captions, params):
    feats = encode_images(images, params['conv_w'], params['conv_b'])
    return decoder_forward(feats, captions, params)


if __name__ == "__main__":
    key = jax.random.PRNGKey(0)
    k_img, k_cap = jax.random.split(key)
    B, H, W, T = 2, 16, 16, 9                      # 9 tokens -> captions_len = 8 steps
    images = jax.random.normal(k_img, (B, 3, H, W), jnp.float32)   # NCHW like PyTorch
    captions = jax.random.randint(k_cap, (B, T), 0, VOCAB_SIZE, dtype=jnp.int32)
    params = init_params(jax.random.PRNGKey(42))

    preds, alphas = encoder_decoder_forward(images, captions, params)
    jax.block_until_ready((preds, alphas))

    P = (H // KSIZE) * (W // KSIZE)
    assert preds.shape == (B, T - 1, VOCAB_SIZE), preds.shape
    assert alphas.shape == (B, T - 1, P), alphas.shape
    assert bool(jnp.all(jnp.isfinite(preds))) and bool(jnp.all(jnp.isfinite(alphas)))
    print("KERNEL_OK")
</pallas_src>

<mosaic_0001>
module attributes {stable_mosaic.version = 11 : i64} {
  func.func @_encoder_matmul_kernel(%arg0: i32, %arg1: memref<32x48xf32, #tpu.memory_space<vmem>>, %arg2: memref<48x32xf32, #tpu.memory_space<vmem>>, %arg3: memref<1x32xf32, #tpu.memory_space<vmem>>, %arg4: memref<32x32xf32, #tpu.memory_space<vmem>>) attributes {dimension_semantics = [#tpu.dimension_semantics<arbitrary>], iteration_bounds = array<i64: 1>, scalar_prefetch = 0 : i64, scratch_operands = 0 : i64, tpu.core_type = #tpu.core_type<tc>, window_params = [{pipeline_mode = #tpu.pipeline_mode<synchronous>, transform_indices = @transform_0, window_bounds = array<i64: 32, 48>}, {pipeline_mode = #tpu.pipeline_mode<synchronous>, transform_indices = @transform_1, window_bounds = array<i64: 48, 32>}, {pipeline_mode = #tpu.pipeline_mode<synchronous>, transform_indices = @transform_2, window_bounds = array<i64: 1, 32>}, {pipeline_mode = #tpu.pipeline_mode<synchronous>, transform_indices = @transform_3, window_bounds = array<i64: 32, 32>}]} {
    %c0 = arith.constant 0 : index
    %c0_0 = arith.constant 0 : index
    %0 = vector.load %arg1[%c0, %c0_0] : memref<32x48xf32, #tpu.memory_space<vmem>>, vector<32x48xf32>
    %c0_1 = arith.constant 0 : index
    %c0_2 = arith.constant 0 : index
    %1 = vector.load %arg2[%c0_1, %c0_2] : memref<48x32xf32, #tpu.memory_space<vmem>>, vector<48x32xf32>
    %cst = arith.constant dense<0.000000e+00> : vector<32x32xf32>
    %2 = tpu.matmul %0, %1, %cst {dimension_numbers = #tpu.dot_dimension_numbers<[1], [0], [0], [1], [0, 0, 1, 1], [], []>} : vector<32x48xf32>, vector<48x32xf32>, vector<32x32xf32> -> vector<32x32xf32>
    %c0_3 = arith.constant 0 : index
    %c0_4 = arith.constant 0 : index
    %3 = vector.load %arg3[%c0_3, %c0_4] : memref<1x32xf32, #tpu.memory_space<vmem>>, vector<1x32xf32>
    %4 = vector.broadcast %3 : vector<1x32xf32> to vector<32x32xf32>
    %5 = arith.addf %2, %4 : vector<32x32xf32>
    %c0_5 = arith.constant 0 : index
    %c0_6 = arith.constant 0 : index
    %6 = vector.load %arg4[%c0_5, %c0_6] : memref<32x32xf32, #tpu.memory_space<vmem>>, vector<32x32xf32>
    tpu.vector_store %arg4[%c0_5, %c0_6], %5 {strides = array<i32>} : memref<32x32xf32, #tpu.memory_space<vmem>>, vector<32x32xf32>,
    return
  }
  func.func @transform_0(%arg0: i32) -> (i32, i32) {
    %c0_i32 = arith.constant 0 : i32
    %c0_i32_0 = arith.constant 0 : i32
    %c0_i32_1 = arith.constant 0 : i32
    return %c0_i32, %c0_i32_0 : i32, i32
  }
  func.func @transform_1(%arg0: i32) -> (i32, i32) {
    %c0_i32 = arith.constant 0 : i32
    %c0_i32_0 = arith.constant 0 : i32
    %c0_i32_1 = arith.constant 0 : i32
    return %c0_i32, %c0_i32_0 : i32, i32
  }
  func.func @transform_2(%arg0: i32) -> (i32, i32) {
    %c0_i32 = arith.constant 0 : i32
    %c0_i32_0 = arith.constant 0 : i32
    %c0_i32_1 = arith.constant 0 : i32
    return %c0_i32, %c0_i32_0 : i32, i32
  }
  func.func @transform_3(%arg0: i32) -> (i32, i32) {
    %c0_i32 = arith.constant 0 : i32
    %c0_i32_0 = arith.constant 0 : i32
    %c0_i32_1 = arith.constant 0 : i32
    return %c0_i32, %c0_i32_0 : i32, i32
  }
}

</mosaic_0001>

<llo_original>
// kernel: tpu_custom_call.1
$region0: #{tpu_custom_call.1}
  #allocation0 [shape = 'u32[]', space=smem, size = 0x4, offset = 0x4, fixed_abs, tag = 'smem constant byte address 0x4 - core index']
  #allocation1 [shape = 'u32[72,128]{1,0:T(1,128)}', space=vmem, size = 0x9000, scoped, tag = 'internal scratch']
  %s0 = inlined_call_operand.vmem [shape: f32[32,48], index: 0, kind: input, shape index: {}]
  %s1 = inlined_call_operand.vmem [shape: f32[48,32], index: 1, kind: input, shape index: {}]
  %s2 = inlined_call_operand.vmem [shape: f32[1,32], index: 2, kind: input, shape index: {}]
  %s3 = inlined_call_operand.hbm [shape: f32[32,32], index: 3, kind: output, shape index: {}]
  %s4 = sld [smem:[#allocation0]]
  $region22: #{tpu_custom_call.1} parent=0
    _
  %s6 = ssub.s32 1, %s4
  %s7 = scalar_select 0, %s6, %s4
  $region1: #{tpu_custom_call.1} parent=0
    #allocation2 [shape = 'u8[16384]{0}', space=vmem, size = 0x4000, scoped, tag = 'output window, operand 0, single buffered']
    #allocation3 [shape = 's32[1]{0}', space=sflag, size = 0x4, scoped, tag = 'scoped memory for tpu_custom_call.1']
    %8 = vsyncpa [#allocation3], 0
    // Predicated region
    $region2: #{tpu_custom_call.1} parent=1 // pred_check
      _
    $region3: #{tpu_custom_call.1} parent=1 // pred_check_branch
      %10 = sbr.rel (0) target = $region5
    $region4: #{tpu_custom_call.1} parent=1 // pred_region
      _
    $region5: #{tpu_custom_call.1} parent=1 // pred_fallthru
      _
    // Predicated region
    $region6: #{tpu_custom_call.1} parent=1 // pred_check
      _
    $region7: #{tpu_custom_call.1} parent=1 // pred_check_branch
      %12 = sbr.rel (0) target = $region9
    $region8: #{tpu_custom_call.1} parent=1 // pred_region
      _
    $region9: #{tpu_custom_call.1} parent=1 // pred_fallthru
      _
    // Predicated region
    $region10: #{tpu_custom_call.1} parent=1 // pred_check
      _
    $region11: #{tpu_custom_call.1} parent=1 // pred_check_branch
      %14 = sbr.rel (0) target = $region13
    $region12: #{tpu_custom_call.1} parent=1 // pred_region
      _
    $region13: #{tpu_custom_call.1} parent=1 // pred_fallthru
      _
    %v15 = vld [vmem:[%s0] sm:$0xff]
    %v16 = vld [vmem:[%s0 + $0x8] sm:$0xff]
    %v17 = vld [vmem:[%s0 + $0x10] sm:$0xff]
    %v18 = vld [vmem:[%s0 + $0x18] sm:$0xff]
    %v19 = vld [vmem:[%s1] sm:$0xff]
    %v20 = vld [vmem:[%s1 + $0x8] sm:$0xff]
    %v21 = vld [vmem:[%s1 + $0x10] sm:$0xff]
    %v22 = vld [vmem:[%s1 + $0x18] sm:$0xff]
    %v23 = vld [vmem:[%s1 + $0x20] sm:$0xff]
    %v24 = vld [vmem:[%s1 + $0x28] sm:$0xff]
    %v25 = vld [vmem:[%s2] sm:$0x1]
    %v27 = vperm.slane %v25, 0
    %vm29 = vcmask 392192
    %v31 = vsel %vm29, %v15, 0
    %v34 = vsel %vm29, %v16, 0
    %v37 = vsel %vm29, %v17, 0
    %v40 = vsel %vm29, %v18, 0
    %42 = vmatpush.msra.mxu0 0.0
    %43 = vmatpush.msra.mxu0 0.0
    %44 = vmatpush.msra.mxu0 0.0
    %45 = vmatpush.msra.mxu0 0.0
    %46 = vmatpush.msra.mxu0 0.0
    %47 = vmatpush.msra.mxu0 0.0
    %48 = vmatpush.msra.mxu0 0.0
    %49 = vmatpush.msra.mxu0 0.0
    %50 = vmatpush.msra.mxu0 0.0
    %51 = vmatpush.msra.mxu0 0.0
    %52 = vmatpush.msra.mxu0 %v24
    %53 = vmatpush.msra.mxu0 %v23
    %54 = vmatpush.msra.mxu0 %v22
    %55 = vmatpush.msra.mxu0 %v21
    %56 = vmatpush.msra.mxu0 %v20
    %57 = vmatpush.msra.mxu0 %v19
    %58 = vmatmul.f32.gmra.mxu0 %v31
    %v59 = vpop.f32.mrf.mxu0
    %v60 = vadd.f32 %v27, %v59
    %61 = vmatmul.f32.gmra.mxu0 %v34
    %v62 = vpop.f32.mrf.mxu0
    %v63 = vadd.f32 %v27, %v62
    %64 = vmatmul.f32.gmra.mxu0 %v37
    %v65 = vpop.f32.mrf.mxu0
    %v66 = vadd.f32 %v27, %v65
    %67 = vmatmul.f32.gmra.mxu0 %v40
    %v68 = vpop.f32.mrf.mxu0
    %v69 = vadd.f32 %v27, %v68
    %70 = vdwg.mxu0
    %vm71 = vcmask 261120
    %72 = vst.msk [vmem:[#allocation2] sm:$0xff] %vm71, %v60
    %73 = vst.msk [vmem:[#allocation2 + $0x8] sm:$0xff] %vm71, %v63
    %74 = vst.msk [vmem:[#allocation2 + $0x10] sm:$0xff] %vm71, %v66
    %75 = vst.msk [vmem:[#allocation2 + $0x18] sm:$0xff] %vm71, %v69
    // Predicated region
    $region14: #{tpu_custom_call.1} parent=1 // pred_check
      _
    $region15: #{tpu_custom_call.1} parent=1 // pred_check_branch
      %77 = sbr.rel (0) target = $region17
    $region16: #{tpu_custom_call.1} parent=1 // pred_region
      %79 = vsyncadd [#allocation3], 0
      %s80 = sshll.u32 [#allocation2], 4
      %s81 = int_to_ptr.vmem [resolvable:$true] %s80
      %s82 = sshll.u32 %s3, 4
      %s83 = int_to_ptr.hbm [resolvable:$true] %s82
      %88 = dma.vmem_to_hbm [thread:$0]  %s81, 512, %s83, [#allocation3], 128, 128, 8
    $region17: #{tpu_custom_call.1} parent=1 // pred_fallthru
      _
    // Predicated region
    $region18: #{tpu_custom_call.1} parent=1 // pred_check
      _
    $region19: #{tpu_custom_call.1} parent=1 // pred_check_branch
      %90 = sbr.rel (0) target = $region21
    $region20: #{tpu_custom_call.1} parent=1 // pred_region
      %92 = dma.done [#allocation3], 512
    $region21: #{tpu_custom_call.1} parent=1 // pred_fallthru
      _
    %93 = vsyncpa [#allocation3], 1

</llo_original>
